<compile_context>
chip_gen: v6e
topology: v6e:2x2x1
jax: 0.10.0
libtpu: 0.0.40
codegen_flags: <defaults>
</compile_context>

<pallas_src>
import jax
import jax.numpy as jnp
from jax.experimental import pallas as pl
from jax.experimental.pallas import tpu as pltpu

_LANE = 128
_SUBLANE = 16          # bf16 packs 16 rows per vreg tile


def _round_up(x, m):
    return (x + m - 1) // m * m


def _vmem_capacity_bytes():
    try:
        return int(pltpu.get_tpu_info().vmem_capacity_bytes)
    except Exception:
        return 64 * 1024 * 1024      # conservative default (v7x per-TensorCore)


def _classification_kernel(x_ref, w_ref, b_ref, out_ref, acc_ref):
    """One (TM, TK) x-tile x (TK, Cp) W^T-tile step; epilogue on last K step."""
    k = pl.program_id(1)

    @pl.when(k == 0)
    def _init():
        acc_ref[...] = jnp.zeros_like(acc_ref)

    # bf16 x bf16 -> f32 accumulate on the MXU.
    acc_ref[...] += jnp.dot(x_ref[...], w_ref[...],
                            preferred_element_type=jnp.float32)

    @pl.when(k == pl.num_programs(1) - 1)
    def _finalize():
        logits = acc_ref[...] + b_ref[...]                  # (TM, Cp) f32
        # Row-wise numerically stable log-softmax. Padded class columns carry
        # bias = -inf, so exp(-inf - m) == 0 and they do not perturb the sum.
        m = jnp.max(logits, axis=-1, keepdims=True)
        shifted = logits - m
        denom = jnp.sum(jnp.exp(shifted), axis=-1, keepdims=True)
        out_ref[...] = (shifted - jnp.log(denom)).astype(out_ref.dtype)


def prepare_classification_params(weight, bias):
    """One-time prep of nn.Linear params: (C, D) weight -> lane-dense bf16
    (D, Cp) W^T plus a (1, Cp) f32 bias row (-inf in padded class columns).

    Hoist / cache this outside any loop: it rewrites the full weight in HBM and
    should not be paid on every forward call."""
    c, d = weight.shape
    cp = _round_up(c, _LANE)
    w_t = jnp.zeros((d, cp), jnp.bfloat16).at[:, :c].set(
        weight.astype(jnp.bfloat16).T)
    b_p = jnp.full((1, cp), -jnp.inf, jnp.float32).at[0, :c].set(
        bias.astype(jnp.float32))
    return w_t, b_p


def _select_tiles(n, d, cp, vmem_cap, tm_max):
    """Pick (TM, TK) from the per-generation VMEM budget."""
    budget = min(int(vmem_cap * 0.5), 96 * 1024 * 1024)
    # Weight stream cost (<=2 buffers, bf16); prefer a single resident K step.
    if 2 * d * cp * 2 <= budget // 2:
        tk = d
    else:
        tk = max(512, (budget // 2) // (2 * cp * 2) // 512 * 512)
    # Per-row bytes: x (2 bufs bf16) + out (2 bufs f32) + f32 accumulator
    # + ~2 live (TM, Cp) f32 log-softmax intermediates.
    per_row = 2 * tk * 2 + 2 * cp * 4 + cp * 4 + 2 * cp * 4
    fixed = 2 * tk * cp * 2 + 2 * cp * 4
    tm = min(tm_max, max(_SUBLANE, (budget - fixed) // per_row))
    if n >= 512:
        # Guarantee >= 2 row steps so ("parallel", ...) splits rows across the
        # two v7x TensorCores (no-op on single-TC v5e/v6e).
        tm = min(tm, _round_up(pl.cdiv(n, 2), _SUBLANE))
    tm = min(tm, _round_up(n, _SUBLANE))
    tm = max(_SUBLANE, tm // _SUBLANE * _SUBLANE)
    return tm, tk


def classification_apply(x, w_t, b_p, num_classes, *, tm_max=1024):
    """Fused linear + log-softmax forward using pre-prepared (w_t, b_p)."""
    n, d = x.shape
    dk, cp = w_t.shape
    assert dk == d and b_p.shape == (1, cp)

    vmem_cap = _vmem_capacity_bytes()
    tm, tk = _select_tiles(n, d, cp, vmem_cap, tm_max)

    x_p = x.astype(jnp.bfloat16)
    w_p = w_t
    if tk < d:
        # Rare large-input_size path: stream the weight over K.  Pad K so every
        # streamed tile is fully valid (garbage K columns would corrupt acc).
        dp = _round_up(d, tk)
        if dp != d:
            # TODO(synk): this pad costs one extra pass over x/W; only hit when
            # the weight cannot be VMEM-resident.
            x_p = jnp.pad(x_p, ((0, 0), (0, dp - d)))
            w_p = jnp.pad(w_p, ((0, dp - d), (0, 0)))
        d_eff = dp
    else:
        tk = d
        d_eff = d
    k_tiles = d_eff // tk
    row_tiles = pl.cdiv(n, tm)

    # VMEM footprint (counts double buffers + f32 softmax intermediates).
    need = (2 * tm * tk * 2          # x tiles (bf16, double buffered)
            + 2 * tk * cp * 2        # W^T tiles (bf16, <=2 buffers)
            + 2 * cp * 4             # bias
            + 2 * tm * cp * 4        # out tiles (f32, double buffered)
            + tm * cp * 4            # f32 accumulator scratch
            + 2 * tm * cp * 4)       # live log-softmax intermediates
    vmem_limit = int(min(max(2 * need, 32 * 1024 * 1024),
                         int(vmem_cap * 0.9)))

    cost = pl.CostEstimate(
        flops=2 * n * d_eff * cp + 5 * n * cp,
        transcendentals=n * (cp + 1),                       # exp + per-row log
        bytes_accessed=n * d_eff * 2 + d_eff * cp * 2 + cp * 4 + n * cp * 4,
    )

    def invoke(single_buffer_resident):
        if single_buffer_resident and k_tiles == 1:
            # W^T / bias block index never changes -> one VMEM buffer suffices.
            res_specs = [
                pl.BlockSpec((tk, cp), lambda i, k: (k, 0),
                             pipeline_mode=pl.Buffered(1)),
                pl.BlockSpec((1, cp), lambda i, k: (0, 0),
                             pipeline_mode=pl.Buffered(1)),
            ]
        else:
            res_specs = [
                pl.BlockSpec((tk, cp), lambda i, k: (k, 0)),
                pl.BlockSpec((1, cp), lambda i, k: (0, 0)),
            ]
        return pl.pallas_call(
            _classification_kernel,
            out_shape=jax.ShapeDtypeStruct((n, cp), jnp.float32),
            grid=(row_tiles, k_tiles),
            in_specs=[pl.BlockSpec((tm, tk), lambda i, k: (i, k))] + res_specs,
            out_specs=pl.BlockSpec((tm, cp), lambda i, k: (i, 0)),
            scratch_shapes=[pltpu.VMEM((tm, cp), jnp.float32)],
            compiler_params=pltpu.CompilerParams(
                dimension_semantics=("parallel", "arbitrary"),
                vmem_limit_bytes=vmem_limit,
            ),
            cost_estimate=cost,
        )(x_p, w_p, b_p)

    try:
        out = invoke(single_buffer_resident=True)
    except Exception:
        # Fallback for jax versions without BlockSpec pipeline_mode /
        # Buffered(1); default double buffering is already counted in `need`.
        out = invoke(single_buffer_resident=False)

    # Drop lane-padding class columns (row count is already exact).
    # TODO(synk): callers that can consume the (N, Cp) padded log-probs should
    # skip this slice to avoid the extra output copy.
    return out[:, :num_classes]


def classification_forward(x, weight, bias, *, tm_max=1024):
    """Convenience wrapper matching Classification.forward with raw nn.Linear
    params; prefer prepare_classification_params + classification_apply in a
    loop so the weight prep is hoisted/cached."""
    w_t, b_p = prepare_classification_params(weight, bias)
    return classification_apply(x, w_t, b_p, weight.shape[0], tm_max=tm_max)


def xavier_uniform(key, shape, dtype=jnp.float32):
    # nn.init.xavier_uniform_ for a 2-D (fan_out, fan_in) weight, gain=1.
    fan_out, fan_in = shape
    bound = (6.0 / (fan_in + fan_out)) ** 0.5
    return jax.random.uniform(key, shape, dtype, minval=-bound, maxval=bound)


if __name__ == "__main__":
    # Small shapes consistent with the module: N nodes, embedding dim, classes.
    N = 16
    input_size = 32
    num_classes = 7

    key = jax.random.PRNGKey(0)
    k_x, k_w, k_b = jax.random.split(key, 3)

    x = jax.random.normal(k_x, (N, input_size), jnp.float32)
    weight = xavier_uniform(k_w, (num_classes, input_size))          # (C, D)
    bias = jax.random.uniform(k_b, (num_classes,), jnp.float32,
                              minval=-0.1, maxval=0.1)

    # One-time param prep (hoisted; cache these in a real training loop).
    w_t, b_p = prepare_classification_params(weight, bias)

    out = classification_apply(x, w_t, b_p, num_classes)
    out = jax.block_until_ready(out)
    assert out.shape == (N, num_classes)

    # f32 reference (exact PyTorch math); bf16 inputs cost ~2-3 decimal digits.
    ref_f32 = jax.nn.log_softmax(x @ weight.T + bias, axis=1)
    assert jnp.allclose(out, ref_f32, atol=5e-2, rtol=5e-2), (
        float(jnp.max(jnp.abs(out - ref_f32))))

    # Tighter check against the same bf16-quantized inputs (matches MXU path).
    xb = x.astype(jnp.bfloat16).astype(jnp.float32)
    wb = weight.astype(jnp.bfloat16).astype(jnp.float32)
    ref_bf16 = jax.nn.log_softmax(xb @ wb.T + bias, axis=1)
    assert jnp.allclose(out, ref_bf16, atol=1e-2, rtol=1e-2), (
        float(jnp.max(jnp.abs(out - ref_bf16))))

    print("KERNEL_OK")
</pallas_src>

<mosaic_0001>
module attributes {stable_mosaic.version = 11 : i64} {
  func.func @_classification_kernel(%arg0: i32, %arg1: i32, %arg2: memref<16x32xbf16, #tpu.memory_space<vmem>>, %arg3: memref<32x128xbf16, #tpu.memory_space<vmem>>, %arg4: memref<1x128xf32, #tpu.memory_space<vmem>>, %arg5: memref<16x128xf32, #tpu.memory_space<vmem>>, %arg6: memref<16x128xf32, #tpu.memory_space<vmem>>) attributes {dimension_semantics = [#tpu.dimension_semantics<parallel>, #tpu.dimension_semantics<arbitrary>], iteration_bounds = array<i64: 1, 1>, scalar_prefetch = 0 : i64, scratch_operands = 1 : i64, tpu.core_type = #tpu.core_type<tc>, window_params = [{transform_indices = @transform_0, window_bounds = array<i64: 16, 32>}, {pipeline_mode = #tpu.pipeline_mode<synchronous>, transform_indices = @transform_1, window_bounds = array<i64: 32, 128>}, {pipeline_mode = #tpu.pipeline_mode<synchronous>, transform_indices = @transform_2, window_bounds = array<i64: 1, 128>}, {transform_indices = @transform_3, window_bounds = array<i64: 16, 128>}]} {
    %c0_i32 = arith.constant 0 : i32
    %0 = arith.cmpi eq, %arg1, %c0_i32 : i32
    %1 = arith.extui %0 : i1 to i32
    %c0_i32_0 = arith.constant 0 : i32
    %2 = arith.cmpi ne, %1, %c0_i32_0 : i32
    scf.if %2 {
      %cst_10 = arith.constant 0.000000e+00 : f32
      %12 = vector.broadcast %cst_10 : f32 to vector<16x128xf32>
      %c0_11 = arith.constant 0 : index
      %c0_12 = arith.constant 0 : index
      %13 = vector.load %arg6[%c0_11, %c0_12] : memref<16x128xf32, #tpu.memory_space<vmem>>, vector<16x128xf32>
      tpu.vector_store %arg6[%c0_11, %c0_12], %12 {strides = array<i32>} : memref<16x128xf32, #tpu.memory_space<vmem>>, vector<16x128xf32>,
    } else {
    }
    %c0 = arith.constant 0 : index
    %c0_1 = arith.constant 0 : index
    %3 = vector.load %arg6[%c0, %c0_1] : memref<16x128xf32, #tpu.memory_space<vmem>>, vector<16x128xf32>
    %c0_2 = arith.constant 0 : index
    %c0_3 = arith.constant 0 : index
    %4 = vector.load %arg2[%c0_2, %c0_3] : memref<16x32xbf16, #tpu.memory_space<vmem>>, vector<16x32xbf16>
    %c0_4 = arith.constant 0 : index
    %c0_5 = arith.constant 0 : index
    %5 = vector.load %arg3[%c0_4, %c0_5] : memref<32x128xbf16, #tpu.memory_space<vmem>>, vector<32x128xbf16>
    %cst = arith.constant dense<0.000000e+00> : vector<16x128xf32>
    %6 = tpu.matmul %4, %5, %cst {dimension_numbers = #tpu.dot_dimension_numbers<[1], [0], [0], [1], [0, 0, 1, 1], [], []>} : vector<16x32xbf16>, vector<32x128xbf16>, vector<16x128xf32> -> vector<16x128xf32>
    %7 = arith.addf %3, %6 : vector<16x128xf32>
    %c0_6 = arith.constant 0 : index
    %c0_7 = arith.constant 0 : index
    %8 = vector.load %arg6[%c0_6, %c0_7] : memref<16x128xf32, #tpu.memory_space<vmem>>, vector<16x128xf32>
    tpu.vector_store %arg6[%c0_6, %c0_7], %7 {strides = array<i32>} : memref<16x128xf32, #tpu.memory_space<vmem>>, vector<16x128xf32>,
    %c0_i32_8 = arith.constant 0 : i32
    %9 = arith.cmpi eq, %arg1, %c0_i32_8 : i32
    %10 = arith.extui %9 : i1 to i32
    %c0_i32_9 = arith.constant 0 : i32
    %11 = arith.cmpi ne, %10, %c0_i32_9 : i32
    scf.if %11 {
      %c0_10 = arith.constant 0 : index
      %c0_11 = arith.constant 0 : index
      %12 = vector.load %arg6[%c0_10, %c0_11] : memref<16x128xf32, #tpu.memory_space<vmem>>, vector<16x128xf32>
      %c0_12 = arith.constant 0 : index
      %c0_13 = arith.constant 0 : index
      %13 = vector.load %arg4[%c0_12, %c0_13] : memref<1x128xf32, #tpu.memory_space<vmem>>, vector<1x128xf32>
      %14 = vector.broadcast %13 : vector<1x128xf32> to vector<16x128xf32>
      %15 = arith.addf %12, %14 : vector<16x128xf32>
      %cst_14 = arith.constant dense<0xFF800000> : vector<16xf32>
      %16 = vector.multi_reduction <maximumf>, %15, %cst_14 [1] : vector<16x128xf32> to vector<16xf32>
      %17 = vector.shape_cast %16 : vector<16xf32> to vector<16x1xf32>
      %18 = vector.broadcast %17 : vector<16x1xf32> to vector<16x128xf32>
      %19 = arith.subf %15, %18 : vector<16x128xf32>
      %20 = math.exp %19 : vector<16x128xf32>
      %cst_15 = arith.constant dense<0.000000e+00> : vector<16xf32>
      %21 = vector.multi_reduction <add>, %20, %cst_15 [1] : vector<16x128xf32> to vector<16xf32>
      %22 = vector.shape_cast %21 : vector<16xf32> to vector<16x1xf32>
      %23 = math.log %22 : vector<16x1xf32>
      %24 = vector.broadcast %23 : vector<16x1xf32> to vector<16x128xf32>
      %25 = arith.subf %19, %24 : vector<16x128xf32>
      %c0_16 = arith.constant 0 : index
      %c0_17 = arith.constant 0 : index
      %26 = vector.load %arg5[%c0_16, %c0_17] : memref<16x128xf32, #tpu.memory_space<vmem>>, vector<16x128xf32>
      tpu.vector_store %arg5[%c0_16, %c0_17], %25 {strides = array<i32>} : memref<16x128xf32, #tpu.memory_space<vmem>>, vector<16x128xf32>,
    } else {
    }
    return
  }
  func.func @transform_0(%arg0: i32, %arg1: i32) -> (i32, i32) {
    %c0_i32 = arith.constant 0 : i32
    return %arg0, %arg1 : i32, i32
  }
  func.func @transform_1(%arg0: i32, %arg1: i32) -> (i32, i32) {
    %c0_i32 = arith.constant 0 : i32
    %c0_i32_0 = arith.constant 0 : i32
    return %arg1, %c0_i32 : i32, i32
  }
  func.func @transform_2(%arg0: i32, %arg1: i32) -> (i32, i32) {
    %c0_i32 = arith.constant 0 : i32
    %c0_i32_0 = arith.constant 0 : i32
    %c0_i32_1 = arith.constant 0 : i32
    return %c0_i32, %c0_i32_0 : i32, i32
  }
  func.func @transform_3(%arg0: i32, %arg1: i32) -> (i32, i32) {
    %c0_i32 = arith.constant 0 : i32
    %c0_i32_0 = arith.constant 0 : i32
    return %arg0, %c0_i32 : i32, i32
  }
}

module attributes {stable_mosaic.version = 11 : i64} {
  func.func @_classification_kernel(%arg0: i32, %arg1: i32, %arg2: memref<16x32xbf16, #tpu.memory_space<vmem>>, %arg3: memref<32x128xbf16, #tpu.memory_space<vmem>>, %arg4: memref<1x128xf32, #tpu.memory_space<vmem>>, %arg5: memref<16x128xf32, #tpu.memory_space<vmem>>, %arg6: memref<16x128xf32, #tpu.memory_space<vmem>>) attributes {dimension_semantics = [#tpu.dimension_semantics<parallel>, #tpu.dimension_semantics<arbitrary>], iteration_bounds = array<i64: 1, 1>, scalar_prefetch = 0 : i64, scratch_operands = 1 : i64, tpu.core_type = #tpu.core_type<tc>, window_params = [{transform_indices = @transform_0, window_bounds = array<i64: 16, 32>}, {transform_indices = @transform_1, window_bounds = array<i64: 32, 128>}, {pipeline_mode = #tpu.pipeline_mode<synchronous>, transform_indices = @transform_2, window_bounds = array<i64: 1, 128>}, {transform_indices = @transform_3, window_bounds = array<i64: 16, 128>}]} {
    %c0_i32 = arith.constant 0 : i32
    %0 = arith.cmpi eq, %arg1, %c0_i32 : i32
    %1 = arith.extui %0 : i1 to i32
    %c0_i32_0 = arith.constant 0 : i32
    %2 = arith.cmpi ne, %1, %c0_i32_0 : i32
    scf.if %2 {
      %cst_10 = arith.constant 0.000000e+00 : f32
      %12 = vector.broadcast %cst_10 : f32 to vector<16x128xf32>
      %c0_11 = arith.constant 0 : index
      %c0_12 = arith.constant 0 : index
      %13 = vector.load %arg6[%c0_11, %c0_12] : memref<16x128xf32, #tpu.memory_space<vmem>>, vector<16x128xf32>
      tpu.vector_store %arg6[%c0_11, %c0_12], %12 {strides = array<i32>} : memref<16x128xf32, #tpu.memory_space<vmem>>, vector<16x128xf32>,
    } else {
    }
    %c0 = arith.constant 0 : index
    %c0_1 = arith.constant 0 : index
    %3 = vector.load %arg6[%c0, %c0_1] : memref<16x128xf32, #tpu.memory_space<vmem>>, vector<16x128xf32>
    %c0_2 = arith.constant 0 : index
    %c0_3 = arith.constant 0 : index
    %4 = vector.load %arg2[%c0_2, %c0_3] : memref<16x32xbf16, #tpu.memory_space<vmem>>, vector<16x32xbf16>
    %c0_4 = arith.constant 0 : index
    %c0_5 = arith.constant 0 : index
    %5 = vector.load %arg3[%c0_4, %c0_5] : memref<32x128xbf16, #tpu.memory_space<vmem>>, vector<32x128xbf16>
    %cst = arith.constant dense<0.000000e+00> : vector<16x128xf32>
    %6 = tpu.matmul %4, %5, %cst {dimension_numbers = #tpu.dot_dimension_numbers<[1], [0], [0], [1], [0, 0, 1, 1], [], []>} : vector<16x32xbf16>, vector<32x128xbf16>, vector<16x128xf32> -> vector<16x128xf32>
    %7 = arith.addf %3, %6 : vector<16x128xf32>
    %c0_6 = arith.constant 0 : index
    %c0_7 = arith.constant 0 : index
    %8 = vector.load %arg6[%c0_6, %c0_7] : memref<16x128xf32, #tpu.memory_space<vmem>>, vector<16x128xf32>
    tpu.vector_store %arg6[%c0_6, %c0_7], %7 {strides = array<i32>} : memref<16x128xf32, #tpu.memory_space<vmem>>, vector<16x128xf32>,
    %c0_i32_8 = arith.constant 0 : i32
    %9 = arith.cmpi eq, %arg1, %c0_i32_8 : i32
    %10 = arith.extui %9 : i1 to i32
    %c0_i32_9 = arith.constant 0 : i32
    %11 = arith.cmpi ne, %10, %c0_i32_9 : i32
    scf.if %11 {
      %c0_10 = arith.constant 0 : index
      %c0_11 = arith.constant 0 : index
      %12 = vector.load %arg6[%c0_10, %c0_11] : memref<16x128xf32, #tpu.memory_space<vmem>>, vector<16x128xf32>
      %c0_12 = arith.constant 0 : index
      %c0_13 = arith.constant 0 : index
      %13 = vector.load %arg4[%c0_12, %c0_13] : memref<1x128xf32, #tpu.memory_space<vmem>>, vector<1x128xf32>
      %14 = vector.broadcast %13 : vector<1x128xf32> to vector<16x128xf32>
      %15 = arith.addf %12, %14 : vector<16x128xf32>
      %cst_14 = arith.constant dense<0xFF800000> : vector<16xf32>
      %16 = vector.multi_reduction <maximumf>, %15, %cst_14 [1] : vector<16x128xf32> to vector<16xf32>
      %17 = vector.shape_cast %16 : vector<16xf32> to vector<16x1xf32>
      %18 = vector.broadcast %17 : vector<16x1xf32> to vector<16x128xf32>
      %19 = arith.subf %15, %18 : vector<16x128xf32>
      %20 = math.exp %19 : vector<16x128xf32>
      %cst_15 = arith.constant dense<0.000000e+00> : vector<16xf32>
      %21 = vector.multi_reduction <add>, %20, %cst_15 [1] : vector<16x128xf32> to vector<16xf32>
      %22 = vector.shape_cast %21 : vector<16xf32> to vector<16x1xf32>
      %23 = math.log %22 : vector<16x1xf32>
      %24 = vector.broadcast %23 : vector<16x1xf32> to vector<16x128xf32>
      %25 = arith.subf %19, %24 : vector<16x128xf32>
      %c0_16 = arith.constant 0 : index
      %c0_17 = arith.constant 0 : index
      %26 = vector.load %arg5[%c0_16, %c0_17] : memref<16x128xf32, #tpu.memory_space<vmem>>, vector<16x128xf32>
      tpu.vector_store %arg5[%c0_16, %c0_17], %25 {strides = array<i32>} : memref<16x128xf32, #tpu.memory_space<vmem>>, vector<16x128xf32>,
    } else {
    }
    return
  }
  func.func @transform_0(%arg0: i32, %arg1: i32) -> (i32, i32) {
    %c0_i32 = arith.constant 0 : i32
    return %arg0, %arg1 : i32, i32
  }
  func.func @transform_1(%arg0: i32, %arg1: i32) -> (i32, i32) {
    %c0_i32 = arith.constant 0 : i32
    %c0_i32_0 = arith.constant 0 : i32
    return %arg1, %c0_i32 : i32, i32
  }
  func.func @transform_2(%arg0: i32, %arg1: i32) -> (i32, i32) {
    %c0_i32 = arith.constant 0 : i32
    %c0_i32_0 = arith.constant 0 : i32
    %c0_i32_1 = arith.constant 0 : i32
    return %c0_i32, %c0_i32_0 : i32, i32
  }
  func.func @transform_3(%arg0: i32, %arg1: i32) -> (i32, i32) {
    %c0_i32 = arith.constant 0 : i32
    %c0_i32_0 = arith.constant 0 : i32
    return %arg0, %c0_i32 : i32, i32
  }
}

</mosaic_0001>

<llo_original>
// kernel: tpu_custom_call.1
$region0: #{tpu_custom_call.1}
  #allocation0 [shape = 'u32[]', space=smem, size = 0x4, offset = 0x4, fixed_abs, tag = 'smem constant byte address 0x4 - core index']
  #allocation1 [shape = 'u32[144,128]{1,0:T(1,128)}', space=vmem, size = 0x12000, scoped, tag = 'internal scratch']
  #allocation2 [shape = 'f32[16,128]{1,0:T(8,128)}', space=vmem, size = 0x2000, scoped, tag = 'scratch operand']
  %s0 = inlined_call_operand.hbm [shape: bf16[16,32], index: 0, kind: input, shape index: {}]
  %s1 = inlined_call_operand.hbm [shape: bf16[32,128], index: 1, kind: input, shape index: {}]
  %s2 = inlined_call_operand.vmem [shape: f32[1,128], index: 2, kind: input, shape index: {}]
  %s3 = inlined_call_operand.hbm [shape: f32[16,128], index: 3, kind: output, shape index: {}]
  %s4 = sld [smem:[#allocation0]]
  $region38: #{tpu_custom_call.1} parent=0
    _
  %s6 = ssub.s32 1, %s4
  %s7 = scalar_select 0, %s6, %s4
  $region1: #{tpu_custom_call.1} parent=0
    #allocation3 [shape = 'u8[4096]{0}', space=vmem, size = 0x1000, scoped, tag = 'input window, operand 0, single buffered']
    #allocation4 [shape = 's32[1]{0}', space=sflag, size = 0x4, scoped, tag = 'scoped memory for tpu_custom_call.1']
    #allocation5 [shape = 's32[1]{0}', space=sflag, size = 0x4, scoped, tag = 'scoped memory for tpu_custom_call.1']
    #allocation6 [shape = 'u8[8192]{0}', space=vmem, size = 0x2000, scoped, tag = 'input window, operand 1, single buffered']
    #allocation7 [shape = 's32[1]{0}', space=sflag, size = 0x4, scoped, tag = 'scoped memory for tpu_custom_call.1']
    #allocation8 [shape = 'u8[8192]{0}', space=vmem, size = 0x2000, scoped, tag = 'output window, operand 0, single buffered']
    %8 = vsyncpa [#allocation4], 0
    %9 = vsyncpa [#allocation7], 0
    %10 = vsyncpa [#allocation5], 0
    // Predicated region
    $region2: #{tpu_custom_call.1} parent=1 // pred_check
      _
    $region3: #{tpu_custom_call.1} parent=1 // pred_check_branch
      %12 = sbr.rel (0) target = $region5
    $region4: #{tpu_custom_call.1} parent=1 // pred_region
      %s14 = ssub.s32 128, 128
      %15 = vsyncadd [#allocation4], %s14
      %s16 = sshll.u32 [#allocation3], 4
      %s17 = int_to_ptr.vmem [resolvable:$true] %s16
      %22 = dma.hbm_to_vmem [thread:$0]  %s0, 128, %s17, [#allocation4], 64, 64, 4
    $region5: #{tpu_custom_call.1} parent=1 // pred_fallthru
      _
    // Predicated region
    $region6: #{tpu_custom_call.1} parent=1 // pred_check
      _
    $region7: #{tpu_custom_call.1} parent=1 // pred_check_branch
      %24 = sbr.rel (0) target = $region9
    $region8: #{tpu_custom_call.1} parent=1 // pred_region
      %s26 = ssub.s32 256, 256
      %27 = vsyncadd [#allocation7], %s26
      %s28 = sshll.u32 [#allocation6], 4
      %s29 = int_to_ptr.vmem [resolvable:$true] %s28
      %34 = dma.hbm_to_vmem [thread:$0]  %s1, 256, %s29, [#allocation7], 64, 64, 4
    $region9: #{tpu_custom_call.1} parent=1 // pred_fallthru
      _
    // Predicated region
    $region10: #{tpu_custom_call.1} parent=1 // pred_check
      _
    $region11: #{tpu_custom_call.1} parent=1 // pred_check_branch
      %36 = sbr.rel (0) target = $region13
    $region12: #{tpu_custom_call.1} parent=1 // pred_region
      _
    $region13: #{tpu_custom_call.1} parent=1 // pred_fallthru
      _
    // Predicated region
    $region14: #{tpu_custom_call.1} parent=1 // pred_check
      _
    $region15: #{tpu_custom_call.1} parent=1 // pred_check_branch
      %38 = sbr.rel (0) target = $region17
    $region16: #{tpu_custom_call.1} parent=1 // pred_region
      %39 = dma.done [#allocation4], 128
    $region17: #{tpu_custom_call.1} parent=1 // pred_fallthru
      _
    // Predicated region
    $region18: #{tpu_custom_call.1} parent=1 // pred_check
      _
    $region19: #{tpu_custom_call.1} parent=1 // pred_check_branch
      %41 = sbr.rel (0) target = $region21
    $region20: #{tpu_custom_call.1} parent=1 // pred_region
      %42 = dma.done [#allocation7], 256
    $region21: #{tpu_custom_call.1} parent=1 // pred_fallthru
      _
    %p44 = scmp.eq.s32.totalorder 0, 0
    // Predicated region
    $region22: #{tpu_custom_call.1} parent=1 // pred_check
      %p45 = pneg %p44
    $region23: #{tpu_custom_call.1} parent=1 // pred_check_branch
      %47 = sbr.rel (%p45) target = $region25
    $region24: #{tpu_custom_call.1} parent=1 // pred_region
      %48 = vst [vmem:[#allocation2] sm:$0xff] 0.0
      %49 = vst [vmem:[#allocation2 + $0x8] sm:$0xff] 0.0
    $region25: #{tpu_custom_call.1} parent=1 // pred_fallthru
      _
    %v50 = vld [vmem:[#allocation2] sm:$0xff]
    %v51 = vld [vmem:[#allocation2 + $0x8] sm:$0xff]
    %v52 = vld [vmem:[#allocation3] sm:$0xf]
    %v53 = vld [vmem:[#allocation3 + $0x4] sm:$0xf]
    %v54 = vld [vmem:[#allocation6] sm:$0xf]
    %v55 = vld [vmem:[#allocation6 + $0x4] sm:$0xf]
    %v56 = vld [vmem:[#allocation6 + $0x8] sm:$0xf]
    %v57 = vld [vmem:[#allocation6 + $0xc] sm:$0xf]
    %v60 = vunpack.c.l.b16 %v52
    %v61 = vunpack.c.l.b16 %v53
    %v62 = vpack.c.b16 %v61, %v60
    %v67 = vunpack.c.l.b16 %v54
    %v68 = vunpack.c.l.b16 %v55
    %v69 = vunpack.c.l.b16 %v56
    %v70 = vunpack.c.l.b16 %v57
    %v71 = vpack.c.b16 %v68, %v67
    %v72 = vpack.c.b16 %v70, %v69
    %vm75 = vcmask 261120
    %v77 = vsel %vm75, %v62, 0
    %79 = vmatprep.subr.bf16.mxu0 0
    %80 = vmatpush1.bf16.msra.mxu0 0
    %81 = vmatprep.subr.bf16.mxu0 0
    %82 = vmatpush1.bf16.msra.mxu0 0
    %83 = vmatprep.subr.bf16.mxu0 0
    %84 = vmatpush1.bf16.msra.mxu0 0
    %85 = vmatprep.subr.bf16.mxu0 0
    %86 = vmatpush1.bf16.msra.mxu0 0
    %87 = vmatprep.subr.bf16.mxu0 0
    %88 = vmatpush1.bf16.msra.mxu0 0
    %89 = vmatprep.subr.bf16.mxu0 0
    %90 = vmatpush1.bf16.msra.mxu0 0
    %91 = vmatprep.subr.bf16.mxu0 0
    %92 = vmatpush1.bf16.msra.mxu0 %v72
    %93 = vmatprep.subr.bf16.mxu0 0
    %94 = vmatpush1.bf16.msra.mxu0 %v71
    %95 = vmatprep.subr.bf16.mxu0 0
    %96 = vmatpush2.bf16.msra.mxu0 0
    %97 = vmatprep.subr.bf16.mxu0 0
    %98 = vmatpush2.bf16.msra.mxu0 0
    %99 = vmatprep.subr.bf16.mxu0 0
    %100 = vmatpush2.bf16.msra.mxu0 0
    %101 = vmatprep.subr.bf16.mxu0 0
    %102 = vmatpush2.bf16.msra.mxu0 0
    %103 = vmatprep.subr.bf16.mxu0 0
    %104 = vmatpush2.bf16.msra.mxu0 0
    %105 = vmatprep.subr.bf16.mxu0 0
    %106 = vmatpush2.bf16.msra.mxu0 0
    %107 = vmatprep.subr.bf16.mxu0 0
    %108 = vmatpush2.bf16.msra.mxu0 0
    %109 = vmatprep.subr.bf16.mxu0 0
    %110 = vmatpush2.bf16.msra.mxu0 0
    %111 = vmatprep.mubr.bf16.mxu0 0
    %112 = vmatmul.mubr.bf16.gmra.mxu0 %v77
    %v113 = vpop.f32.mrf.mxu0
    %v114 = vadd.f32 0.0, %v113
    %v115 = vpop.f32.mrf.mxu0
    %v116 = vpop.f32.mrf.mxu0
    %v117 = vadd.f32 0.0, %v116
    %v118 = vpop.f32.mrf.mxu0
    %119 = vdwg.mxu0
    %v120 = vadd.f32 %v50, %v114
    %v121 = vadd.f32 %v51, %v117
    %122 = vst [vmem:[#allocation2] sm:$0xff] %v120
    %123 = vst [vmem:[#allocation2 + $0x8] sm:$0xff] %v121
    // Predicated region
    $region26: #{tpu_custom_call.1} parent=1 // pred_check
      %p124 = pneg %p44
    $region27: #{tpu_custom_call.1} parent=1 // pred_check_branch
      %126 = sbr.rel (%p124) target = $region29
    $region28: #{tpu_custom_call.1} parent=1 // pred_region
      %v127 = vld [vmem:[#allocation2] sm:$0xff]
      %v128 = vld [vmem:[#allocation2 + $0x8] sm:$0xff]
      %v129 = vld [vmem:[%s2] sm:$0x1]
      %v131 = vlaneseq
      %v132 = vshrl.u32 %v131, 7
      %v133 = vsub.s32 0, %v132
      %v134 = vrot.slane %v129, %v133
      %v136 = vadd.f32 %v127, %v134
      %v137 = vadd.f32 %v128, %v134
      %138 = vmax.xlane.f32.xlu0 %v136
      %v139 = vpop.xlane.xlu0 %138
      %140 = vmax.xlane.f32.xlu0 %v137
      %v141 = vpop.xlane.xlu0 %140
      %v142 = vsub.f32 %v136, %v139
      %v143 = vsub.f32 %v137, %v141
      %v144 = vmul.f32 %v142, 1.442695
      %v145 = vpow.pop %v144
      %v146 = vmul.f32 %v143, 1.442695
      %v147 = vpow.pop %v146
      %148 = vadd.xlane.f32.xlu0 %v145
      %v149 = vpop.xlane.xlu0 %148
      %150 = vadd.xlane.f32.xlu0 %v147
      %v151 = vpop.xlane.xlu0 %150
      %v152 = vlog2.pop %v149
      %v153 = vmul.f32 %v152, 0.6931472
      %v154 = vlog2.pop %v151
      %v155 = vmul.f32 %v154, 0.6931472
      %v156 = vsub.f32 %v142, %v153
      %v157 = vsub.f32 %v143, %v155
      %158 = vst [vmem:[#allocation8] sm:$0xff] %v156
      %159 = vst [vmem:[#allocation8 + $0x8] sm:$0xff] %v157
    $region29: #{tpu_custom_call.1} parent=1 // pred_fallthru
      _
    // Predicated region
    $region30: #{tpu_custom_call.1} parent=1 // pred_check
      _
    $region31: #{tpu_custom_call.1} parent=1 // pred_check_branch
      %161 = sbr.rel (0) target = $region33
    $region32: #{tpu_custom_call.1} parent=1 // pred_region
      %s163 = ssub.s32 256, 256
      %164 = vsyncadd [#allocation5], %s163
      %s165 = sshll.u32 [#allocation8], 4
      %s166 = int_to_ptr.vmem [resolvable:$true] %s165
      %171 = dma.vmem_to_hbm [thread:$0]  %s166, 256, %s3, [#allocation5], 128, 128, 8
    $region33: #{tpu_custom_call.1} parent=1 // pred_fallthru
      _
    // Predicated region
    $region34: #{tpu_custom_call.1} parent=1 // pred_check
      _
    $region35: #{tpu_custom_call.1} parent=1 // pred_check_branch
      %173 = sbr.rel (0) target = $region37
    $region36: #{tpu_custom_call.1} parent=1 // pred_region
      %174 = dma.done [#allocation5], 256
    $region37: #{tpu_custom_call.1} parent=1 // pred_fallthru
      _
    %175 = vsyncpa [#allocation4], 1
    %176 = vsyncpa [#allocation7], 1
    %177 = vsyncpa [#allocation5], 1

// kernel: tpu_custom_call.1
$region0: #{tpu_custom_call.1}
  #allocation0 [shape = 'u32[]', space=smem, size = 0x4, offset = 0x4, fixed_abs, tag = 'smem constant byte address 0x4 - core index']
  #allocation1 [shape = 'u32[144,128]{1,0:T(1,128)}', space=vmem, size = 0x12000, scoped, tag = 'internal scratch']
  #allocation2 [shape = 'f32[16,128]{1,0:T(8,128)}', space=vmem, size = 0x2000, scoped, tag = 'scratch operand']
  %s0 = inlined_call_operand.hbm [shape: bf16[16,32], index: 0, kind: input, shape index: {}]
  %s1 = inlined_call_operand.hbm [shape: bf16[32,128], index: 1, kind: input, shape index: {}]
  %s2 = inlined_call_operand.vmem [shape: f32[1,128], index: 2, kind: input, shape index: {}]
  %s3 = inlined_call_operand.hbm [shape: f32[16,128], index: 3, kind: output, shape index: {}]
  %s4 = sld [smem:[#allocation0]]
  $region38: #{tpu_custom_call.1} parent=0
    _
  %s6 = ssub.s32 1, %s4
  %s7 = scalar_select 0, %s6, %s4
  $region1: #{tpu_custom_call.1} parent=0
    #allocation3 [shape = 'u8[4096]{0}', space=vmem, size = 0x1000, scoped, tag = 'input window, operand 0, single buffered']
    #allocation4 [shape = 's32[1]{0}', space=sflag, size = 0x4, scoped, tag = 'scoped memory for tpu_custom_call.1']
    #allocation5 [shape = 's32[1]{0}', space=sflag, size = 0x4, scoped, tag = 'scoped memory for tpu_custom_call.1']
    #allocation6 [shape = 'u8[8192]{0}', space=vmem, size = 0x2000, scoped, tag = 'input window, operand 1, single buffered']
    #allocation7 [shape = 's32[1]{0}', space=sflag, size = 0x4, scoped, tag = 'scoped memory for tpu_custom_call.1']
    #allocation8 [shape = 'u8[8192]{0}', space=vmem, size = 0x2000, scoped, tag = 'output window, operand 0, single buffered']
    %8 = vsyncpa [#allocation4], 0
    %9 = vsyncpa [#allocation7], 0
    %10 = vsyncpa [#allocation5], 0
    // Predicated region
    $region2: #{tpu_custom_call.1} parent=1 // pred_check
      _
    $region3: #{tpu_custom_call.1} parent=1 // pred_check_branch
      %12 = sbr.rel (0) target = $region5
    $region4: #{tpu_custom_call.1} parent=1 // pred_region
      %s14 = ssub.s32 128, 128
      %15 = vsyncadd [#allocation4], %s14
      %s16 = sshll.u32 [#allocation3], 4
      %s17 = int_to_ptr.vmem [resolvable:$true] %s16
      %22 = dma.hbm_to_vmem [thread:$0]  %s0, 128, %s17, [#allocation4], 64, 64, 4
    $region5: #{tpu_custom_call.1} parent=1 // pred_fallthru
      _
    // Predicated region
    $region6: #{tpu_custom_call.1} parent=1 // pred_check
      _
    $region7: #{tpu_custom_call.1} parent=1 // pred_check_branch
      %24 = sbr.rel (0) target = $region9
    $region8: #{tpu_custom_call.1} parent=1 // pred_region
      %s26 = ssub.s32 256, 256
      %27 = vsyncadd [#allocation7], %s26
      %s28 = sshll.u32 [#allocation6], 4
      %s29 = int_to_ptr.vmem [resolvable:$true] %s28
      %34 = dma.hbm_to_vmem [thread:$0]  %s1, 256, %s29, [#allocation7], 64, 64, 4
    $region9: #{tpu_custom_call.1} parent=1 // pred_fallthru
      _
    // Predicated region
    $region10: #{tpu_custom_call.1} parent=1 // pred_check
      _
    $region11: #{tpu_custom_call.1} parent=1 // pred_check_branch
      %36 = sbr.rel (0) target = $region13
    $region12: #{tpu_custom_call.1} parent=1 // pred_region
      _
    $region13: #{tpu_custom_call.1} parent=1 // pred_fallthru
      _
    // Predicated region
    $region14: #{tpu_custom_call.1} parent=1 // pred_check
      _
    $region15: #{tpu_custom_call.1} parent=1 // pred_check_branch
      %38 = sbr.rel (0) target = $region17
    $region16: #{tpu_custom_call.1} parent=1 // pred_region
      %39 = dma.done [#allocation4], 128
    $region17: #{tpu_custom_call.1} parent=1 // pred_fallthru
      _
    // Predicated region
    $region18: #{tpu_custom_call.1} parent=1 // pred_check
      _
    $region19: #{tpu_custom_call.1} parent=1 // pred_check_branch
      %41 = sbr.rel (0) target = $region21
    $region20: #{tpu_custom_call.1} parent=1 // pred_region
      %42 = dma.done [#allocation7], 256
    $region21: #{tpu_custom_call.1} parent=1 // pred_fallthru
      _
    %p44 = scmp.eq.s32.totalorder 0, 0
    // Predicated region
    $region22: #{tpu_custom_call.1} parent=1 // pred_check
      %p45 = pneg %p44
    $region23: #{tpu_custom_call.1} parent=1 // pred_check_branch
      %47 = sbr.rel (%p45) target = $region25
    $region24: #{tpu_custom_call.1} parent=1 // pred_region
      %48 = vst [vmem:[#allocation2] sm:$0xff] 0.0
      %49 = vst [vmem:[#allocation2 + $0x8] sm:$0xff] 0.0
    $region25: #{tpu_custom_call.1} parent=1 // pred_fallthru
      _
    %v50 = vld [vmem:[#allocation2] sm:$0xff]
    %v51 = vld [vmem:[#allocation2 + $0x8] sm:$0xff]
    %v52 = vld [vmem:[#allocation3] sm:$0xf]
    %v53 = vld [vmem:[#allocation3 + $0x4] sm:$0xf]
    %v54 = vld [vmem:[#allocation6] sm:$0xf]
    %v55 = vld [vmem:[#allocation6 + $0x4] sm:$0xf]
    %v56 = vld [vmem:[#allocation6 + $0x8] sm:$0xf]
    %v57 = vld [vmem:[#allocation6 + $0xc] sm:$0xf]
    %v60 = vunpack.c.l.b16 %v52
    %v61 = vunpack.c.l.b16 %v53
    %v62 = vpack.c.b16 %v61, %v60
    %v67 = vunpack.c.l.b16 %v54
    %v68 = vunpack.c.l.b16 %v55
    %v69 = vunpack.c.l.b16 %v56
    %v70 = vunpack.c.l.b16 %v57
    %v71 = vpack.c.b16 %v68, %v67
    %v72 = vpack.c.b16 %v70, %v69
    %vm75 = vcmask 261120
    %v77 = vsel %vm75, %v62, 0
    %79 = vmatprep.subr.bf16.mxu0 0
    %80 = vmatpush1.bf16.msra.mxu0 0
    %81 = vmatprep.subr.bf16.mxu0 0
    %82 = vmatpush1.bf16.msra.mxu0 0
    %83 = vmatprep.subr.bf16.mxu0 0
    %84 = vmatpush1.bf16.msra.mxu0 0
    %85 = vmatprep.subr.bf16.mxu0 0
    %86 = vmatpush1.bf16.msra.mxu0 0
    %87 = vmatprep.subr.bf16.mxu0 0
    %88 = vmatpush1.bf16.msra.mxu0 0
    %89 = vmatprep.subr.bf16.mxu0 0
    %90 = vmatpush1.bf16.msra.mxu0 0
    %91 = vmatprep.subr.bf16.mxu0 0
    %92 = vmatpush1.bf16.msra.mxu0 %v72
    %93 = vmatprep.subr.bf16.mxu0 0
    %94 = vmatpush1.bf16.msra.mxu0 %v71
    %95 = vmatprep.subr.bf16.mxu0 0
    %96 = vmatpush2.bf16.msra.mxu0 0
    %97 = vmatprep.subr.bf16.mxu0 0
    %98 = vmatpush2.bf16.msra.mxu0 0
    %99 = vmatprep.subr.bf16.mxu0 0
    %100 = vmatpush2.bf16.msra.mxu0 0
    %101 = vmatprep.subr.bf16.mxu0 0
    %102 = vmatpush2.bf16.msra.mxu0 0
    %103 = vmatprep.subr.bf16.mxu0 0
    %104 = vmatpush2.bf16.msra.mxu0 0
    %105 = vmatprep.subr.bf16.mxu0 0
    %106 = vmatpush2.bf16.msra.mxu0 0
    %107 = vmatprep.subr.bf16.mxu0 0
    %108 = vmatpush2.bf16.msra.mxu0 0
    %109 = vmatprep.subr.bf16.mxu0 0
    %110 = vmatpush2.bf16.msra.mxu0 0
    %111 = vmatprep.mubr.bf16.mxu0 0
    %112 = vmatmul.mubr.bf16.gmra.mxu0 %v77
    %v113 = vpop.f32.mrf.mxu0
    %v114 = vadd.f32 0.0, %v113
    %v115 = vpop.f32.mrf.mxu0
    %v116 = vpop.f32.mrf.mxu0
    %v117 = vadd.f32 0.0, %v116
    %v118 = vpop.f32.mrf.mxu0
    %119 = vdwg.mxu0
    %v120 = vadd.f32 %v50, %v114
    %v121 = vadd.f32 %v51, %v117
    %122 = vst [vmem:[#allocation2] sm:$0xff] %v120
    %123 = vst [vmem:[#allocation2 + $0x8] sm:$0xff] %v121
    // Predicated region
    $region26: #{tpu_custom_call.1} parent=1 // pred_check
      %p124 = pneg %p44
    $region27: #{tpu_custom_call.1} parent=1 // pred_check_branch
      %126 = sbr.rel (%p124) target = $region29
    $region28: #{tpu_custom_call.1} parent=1 // pred_region
      %v127 = vld [vmem:[#allocation2] sm:$0xff]
      %v128 = vld [vmem:[#allocation2 + $0x8] sm:$0xff]
      %v129 = vld [vmem:[%s2] sm:$0x1]
      %v131 = vlaneseq
      %v132 = vshrl.u32 %v131, 7
      %v133 = vsub.s32 0, %v132
      %v134 = vrot.slane %v129, %v133
      %v136 = vadd.f32 %v127, %v134
      %v137 = vadd.f32 %v128, %v134
      %138 = vmax.xlane.f32.xlu0 %v136
      %v139 = vpop.xlane.xlu0 %138
      %140 = vmax.xlane.f32.xlu0 %v137
      %v141 = vpop.xlane.xlu0 %140
      %v142 = vsub.f32 %v136, %v139
      %v143 = vsub.f32 %v137, %v141
      %v144 = vmul.f32 %v142, 1.442695
      %v145 = vpow.pop %v144
      %v146 = vmul.f32 %v143, 1.442695
      %v147 = vpow.pop %v146
      %148 = vadd.xlane.f32.xlu0 %v145
      %v149 = vpop.xlane.xlu0 %148
      %150 = vadd.xlane.f32.xlu0 %v147
      %v151 = vpop.xlane.xlu0 %150
      %v152 = vlog2.pop %v149
      %v153 = vmul.f32 %v152, 0.6931472
      %v154 = vlog2.pop %v151
      %v155 = vmul.f32 %v154, 0.6931472
      %v156 = vsub.f32 %v142, %v153
      %v157 = vsub.f32 %v143, %v155
      %158 = vst [vmem:[#allocation8] sm:$0xff] %v156
      %159 = vst [vmem:[#allocation8 + $0x8] sm:$0xff] %v157
    $region29: #{tpu_custom_call.1} parent=1 // pred_fallthru
      _
    // Predicated region
    $region30: #{tpu_custom_call.1} parent=1 // pred_check
      _
    $region31: #{tpu_custom_call.1} parent=1 // pred_check_branch
      %161 = sbr.rel (0) target = $region33
    $region32: #{tpu_custom_call.1} parent=1 // pred_region
      %s163 = ssub.s32 256, 256
      %164 = vsyncadd [#allocation5], %s163
      %s165 = sshll.u32 [#allocation8], 4
      %s166 = int_to_ptr.vmem [resolvable:$true] %s165
      %171 = dma.vmem_to_hbm [thread:$0]  %s166, 256, %s3, [#allocation5], 128, 128, 8
    $region33: #{tpu_custom_call.1} parent=1 // pred_fallthru
      _
    // Predicated region
    $region34: #{tpu_custom_call.1} parent=1 // pred_check
      _
    $region35: #{tpu_custom_call.1} parent=1 // pred_check_branch
      %173 = sbr.rel (0) target = $region37
    $region36: #{tpu_custom_call.1} parent=1 // pred_region
      %174 = dma.done [#allocation5], 256
    $region37: #{tpu_custom_call.1} parent=1 // pred_fallthru
      _
    %175 = vsyncpa [#allocation4], 1
    %176 = vsyncpa [#allocation7], 1
    %177 = vsyncpa [#allocation5], 1

</llo_original>
